<compile_context>
chip_gen: v6e
topology: v6e:2x2x1
jax: 0.10.0
libtpu: 0.0.40
codegen_flags: <defaults>
</compile_context>

<pallas_src>
import math
from functools import partial

import jax
import jax.numpy as jnp
from jax.experimental import pallas as pl
from jax.experimental.pallas import tpu as pltpu


# ---------------------------------------------------------------------------
# Kernel
# ---------------------------------------------------------------------------

def _gelu_exact(x):
    # torch nn.GELU() default (erf-based)
    return 0.5 * x * (1.0 + jax.lax.erf(x * (1.0 / math.sqrt(2.0))))


def _value_function_kernel(use_uncertainty, inv_seq_len, seq_chunk, *refs):
    if use_uncertainty:
        (x_ref, w0_ref, b0_ref, g_ref, bt_ref, w1_ref, b1_ref, w2_ref, b2_ref,
         wu0_ref, bu0_ref, wu1_ref, bu1_ref,
         value_ref, unc_ref, acc_ref) = refs
    else:
        (x_ref, w0_ref, b0_ref, g_ref, bt_ref, w1_ref, b1_ref, w2_ref, b2_ref,
         value_ref, acc_ref) = refs

    s = pl.program_id(1)

    @pl.when(s == 0)
    def _():
        acc_ref[...] = jnp.zeros_like(acc_ref)

    # ---- streaming mean-over-seq reduction (the mem-bound phase) ----------
    ts = x_ref.shape[1]
    n_chunks = ts // seq_chunk
    if n_chunks <= 1:
        acc_ref[...] += jnp.sum(x_ref[...].astype(jnp.float32), axis=1)
    else:
        # Chunked accumulation keeps the (possibly narrow-dtype) cast streaming
        # through vregs instead of materializing a full f32 copy of the block.
        def _chunk(c, carry):
            start = pl.multiple_of(c * seq_chunk, seq_chunk)
            acc_ref[...] += jnp.sum(
                x_ref[:, pl.ds(start, seq_chunk), :].astype(jnp.float32), axis=1)
            return carry

        jax.lax.fori_loop(0, n_chunks, _chunk, 0, unroll=(n_chunks <= 4))

    # ---- tiny MLP heads, once per batch tile, on VMEM-resident pooled ------
    @pl.when(s == pl.num_programs(1) - 1)
    def _():
        pooled = acc_ref[...] * inv_seq_len                      # [TB, H] f32 mean
        wdt = w0_ref.dtype                                       # bf16 weights

        # value_net: Linear -> LayerNorm -> GELU -> Linear -> GELU -> Linear
        h = (jnp.dot(pooled.astype(wdt), w0_ref[...],
                     preferred_element_type=jnp.float32) + b0_ref[...])
        mu = jnp.mean(h, axis=-1, keepdims=True)
        var = jnp.mean(jnp.square(h - mu), axis=-1, keepdims=True)
        hn = (h - mu) * jax.lax.rsqrt(var + 1e-5)                # nn.LayerNorm eps
        hn = hn * g_ref[...] + bt_ref[...]
        a = _gelu_exact(hn)
        h2 = (jnp.dot(a.astype(wdt), w1_ref[...],
                      preferred_element_type=jnp.float32) + b1_ref[...])
        a2 = _gelu_exact(h2)
        # Hh -> 1 projection on the VPU (lane reduce) instead of an N=1 MXU pass.
        v = jnp.sum(a2 * w2_ref[...], axis=-1, keepdims=True) + b2_ref[...]
        value_ref[...] = v.astype(value_ref.dtype)               # [TB, 1]

        if use_uncertainty:
            # uncertainty_net: Linear -> GELU -> Linear -> sigmoid
            hu = (jnp.dot(pooled.astype(wdt), wu0_ref[...],
                          preferred_element_type=jnp.float32) + bu0_ref[...])
            au = _gelu_exact(hu)
            u = jnp.sum(au * wu1_ref[...], axis=-1, keepdims=True) + bu1_ref[...]
            unc_ref[...] = jax.nn.sigmoid(u).astype(unc_ref.dtype)


# ---------------------------------------------------------------------------
# Tiling / VMEM planning helpers
# ---------------------------------------------------------------------------

def _divisors(n):
    ds = set()
    i = 1
    while i * i <= n:
        if n % i == 0:
            ds.add(i)
            ds.add(n // i)
        i += 1
    return ds


def _legal_tiles(total, granule):
    """Divisors of `total` that are multiples of `granule`, plus the full extent
    (full-extent blocks are always legal).  Sorted descending."""
    tiles = {d for d in _divisors(total) if d % granule == 0}
    tiles.add(total)
    return sorted(tiles, reverse=True)


def _block_spec(shape, index_map, buffers=None):
    """BlockSpec with optional explicit buffer count (falls back gracefully if
    this JAX build's BlockSpec does not accept pipeline_mode)."""
    if buffers is None:
        return pl.BlockSpec(shape, index_map)
    try:
        return pl.BlockSpec(shape, index_map, pipeline_mode=pl.Buffered(buffers))
    except TypeError:
        return pl.BlockSpec(shape, index_map)


def _plan_tiles(B, S, H, in_itemsize, w_bytes):
    """Pick (TB, TS) so the streaming block + resident weights + accumulator fit
    the per-generation VMEM budget."""
    try:
        vmem_phys = int(pltpu.get_tpu_info().vmem_capacity_bytes)
    except Exception:
        vmem_phys = 64 << 20            # conservative default (v7x per-core VMEM)
    budget = int(vmem_phys * 0.75)      # ~48 MiB on v7x, ~96 MiB on v5e/v6e

    # Batch tile: multiple of 8 (or full B); on big batches cap at B//2 so the
    # "parallel" axis has work for both v7x TensorCores.
    tb_all = _legal_tiles(B, 8)
    tb_cand = [t for t in tb_all if t <= 256] or [min(tb_all)]
    if B >= 16:
        halved = [t for t in tb_cand if B // t >= 2]
        if halved:
            tb_cand = halved

    # Seq-tile granule is dtype-aware: 8 rows (f32), 16 (bf16), 32 (int8/fp8).
    granule_s = {4: 8, 2: 16, 1: 32}.get(in_itemsize, 8)
    ts_cand = _legal_tiles(S, granule_s)

    headroom = 4 << 20
    for tb in tb_cand:
        # single-buffered weights + f32 accumulator + epilogue f32 temps + outputs
        fixed = w_bytes + tb * H * 4 + 4 * tb * H * 4 + 64 * tb + headroom
        avail = budget - fixed
        if avail <= 0:
            continue
        max_ts = avail // (2 * tb * H * in_itemsize)     # double-buffered input
        for ts in ts_cand:
            if ts <= max_ts:
                return tb, ts, vmem_phys, budget
    # Nothing fits comfortably: smallest legal tiles; vmem_limit is clamped later.
    return min(tb_cand), min(ts_cand), vmem_phys, budget


# ---------------------------------------------------------------------------
# Wrapper
# ---------------------------------------------------------------------------

@partial(jax.jit, static_argnames=("use_uncertainty",))
def value_function_forward(hidden_states, params, *, use_uncertainty=True):
    """hidden_states: [B, S, H] -> (value [B, 1], uncertainty [B, 1] or None)."""
    B, S, H = hidden_states.shape
    Hh = H // 2

    in_itemsize = jnp.dtype(hidden_states.dtype).itemsize
    names = ["w0", "b0", "gamma", "beta", "w1", "b1", "w2", "b2"]
    if use_uncertainty:
        names += ["wu0", "bu0", "wu1", "bu1"]
    w_bytes = sum(math.prod(params[n].shape) * jnp.dtype(params[n].dtype).itemsize
                  for n in names)

    TB, TS, vmem_phys, budget = _plan_tiles(B, S, H, in_itemsize, w_bytes)
    grid = (B // TB, S // TS)

    # Deepen the input pipeline when the streaming tile is small & cheap
    # (many grid steps expose per-step overhead / DMA latency).
    in_block_bytes = TB * TS * H * in_itemsize
    fixed_bytes = w_bytes + 5 * TB * H * 4 + (4 << 20)
    n_inbuf = 2
    if grid[1] >= 4 and in_block_bytes <= (2 << 20) and \
            3 * in_block_bytes + fixed_bytes <= budget:
        n_inbuf = 3

    # In-kernel seq chunk for the streaming sum.
    if TS <= 512:
        seq_chunk = TS
    else:
        seq_chunk = next((d for d in sorted(_divisors(TS), reverse=True)
                          if d <= 512 and d % 8 == 0), TS)

    x_spec = _block_spec((TB, TS, H), lambda b, s: (b, s, 0),
                         buffers=(3 if n_inbuf == 3 else None))

    def w_spec(shape):
        zeros = (0,) * len(shape)
        # Constant index_map => single-buffer: double-buffering resident weights
        # is pure VMEM waste (W0 is HxH).
        return _block_spec(shape, lambda b, s, _z=zeros: _z, buffers=1)

    in_specs = [
        x_spec,
        w_spec((H, H)), w_spec((1, H)),      # W0, b0
        w_spec((1, H)), w_spec((1, H)),      # LN gamma, beta
        w_spec((H, Hh)), w_spec((1, Hh)),    # W1, b1
        w_spec((1, Hh)), w_spec((1, 1)),     # w2 (stored as a row), b2
    ]
    args = [hidden_states,
            params["w0"], params["b0"], params["gamma"], params["beta"],
            params["w1"], params["b1"], params["w2"], params["b2"]]

    out_shapes = [jax.ShapeDtypeStruct((B, 1), jnp.float32)]
    out_specs = [pl.BlockSpec((TB, 1), lambda b, s: (b, 0))]

    if use_uncertainty:
        in_specs += [w_spec((H, Hh)), w_spec((1, Hh)),   # Wu0, bu0
                     w_spec((1, Hh)), w_spec((1, 1))]    # wu1 (row), bu1
        args += [params["wu0"], params["bu0"], params["wu1"], params["bu1"]]
        out_shapes.append(jax.ShapeDtypeStruct((B, 1), jnp.float32))
        out_specs.append(pl.BlockSpec((TB, 1), lambda b, s: (b, 0)))

    # VMEM limit from the actual footprint of the chosen tiling (+ headroom),
    # capped at 90% of this generation's physical VMEM.
    est = (n_inbuf * in_block_bytes      # streaming input buffers
           + w_bytes                     # single-buffered resident weights
           + TB * H * 4                  # f32 accumulator scratch
           + 4 * TB * H * 4              # epilogue f32 temporaries
           + 4 * TB * 4 * 4)             # output blocks
    vmem_limit = int(min(max(est + (8 << 20), 32 << 20), int(vmem_phys * 0.9)))

    kernel = partial(_value_function_kernel, use_uncertainty, 1.0 / S, seq_chunk)

    outs = pl.pallas_call(
        kernel,
        out_shape=tuple(out_shapes),
        grid_spec=pltpu.PrefetchScalarGridSpec(
            num_scalar_prefetch=0,
            grid=grid,
            in_specs=in_specs,
            out_specs=tuple(out_specs),
            scratch_shapes=[pltpu.VMEM((TB, H), jnp.float32)],
        ),
        compiler_params=pltpu.CompilerParams(
            dimension_semantics=("parallel", "arbitrary"),
            vmem_limit_bytes=vmem_limit,
        ),
    )(*args)

    value = outs[0]
    uncertainty = outs[1] if use_uncertainty else None
    return value, uncertainty


# ---------------------------------------------------------------------------
# Deterministic parameter init (torch-Linear-style uniform bounds, per fan-in)
# ---------------------------------------------------------------------------

def init_params(key, hidden_size, use_uncertainty=True, weight_dtype=jnp.bfloat16):
    H = hidden_size
    Hh = H // 2
    ks = jax.random.split(key, 10)

    def u(k, shape, fan_in, dtype):
        bound = 1.0 / math.sqrt(fan_in)
        return jax.random.uniform(k, shape, jnp.float32, -bound, bound).astype(dtype)

    params = {
        # Matmul weights stored [in, out] (transpose of torch [out, in]) in bf16;
        # biases / LayerNorm params / final 1-column projections stay f32 (tiny).
        "w0": u(ks[0], (H, H), H, weight_dtype),
        "b0": u(ks[1], (1, H), H, jnp.float32),
        "gamma": jnp.ones((1, H), jnp.float32),
        "beta": jnp.zeros((1, H), jnp.float32),
        "w1": u(ks[2], (H, Hh), H, weight_dtype),
        "b1": u(ks[3], (1, Hh), H, jnp.float32),
        "w2": u(ks[4], (1, Hh), Hh, jnp.float32),   # final column stored as a row
        "b2": u(ks[5], (1, 1), Hh, jnp.float32),
    }
    if use_uncertainty:
        params.update({
            "wu0": u(ks[6], (H, Hh), H, weight_dtype),
            "bu0": u(ks[7], (1, Hh), H, jnp.float32),
            "wu1": u(ks[8], (1, Hh), Hh, jnp.float32),
            "bu1": u(ks[9], (1, 1), Hh, jnp.float32),
        })
    return params


# ---------------------------------------------------------------------------
# Pure-JAX reference (same mixed precision as the kernel) for a sanity check
# ---------------------------------------------------------------------------

def _reference_forward(x, params, use_uncertainty):
    pooled = jnp.mean(x.astype(jnp.float32), axis=1)
    wdt = params["w0"].dtype
    h = (jnp.dot(pooled.astype(wdt), params["w0"],
                 preferred_element_type=jnp.float32) + params["b0"])
    mu = jnp.mean(h, -1, keepdims=True)
    var = jnp.mean(jnp.square(h - mu), -1, keepdims=True)
    hn = (h - mu) * jax.lax.rsqrt(var + 1e-5) * params["gamma"] + params["beta"]
    a = _gelu_exact(hn)
    h2 = (jnp.dot(a.astype(wdt), params["w1"],
                  preferred_element_type=jnp.float32) + params["b1"])
    a2 = _gelu_exact(h2)
    v = jnp.sum(a2 * params["w2"], -1, keepdims=True) + params["b2"]
    if use_uncertainty:
        hu = (jnp.dot(pooled.astype(wdt), params["wu0"],
                      preferred_element_type=jnp.float32) + params["bu0"])
        au = _gelu_exact(hu)
        u = jax.nn.sigmoid(jnp.sum(au * params["wu1"], -1, keepdims=True)
                           + params["bu1"])
        return v, u
    return v, None


if __name__ == "__main__":
    B, S, H = 2, 8, 32        # batch, seq_len, hidden_size
    USE_UNC = True            # config.use_uncertainty_estimation

    key = jax.random.PRNGKey(0)
    kx, kp = jax.random.split(key)
    x = jax.random.normal(kx, (B, S, H), jnp.float32)
    params = init_params(kp, H, use_uncertainty=USE_UNC)

    value, uncertainty = value_function_forward(x, params, use_uncertainty=USE_UNC)
    jax.block_until_ready(value)
    if uncertainty is not None:
        jax.block_until_ready(uncertainty)

    assert value.shape == (B, 1)
    if USE_UNC:
        assert uncertainty.shape == (B, 1)
        assert bool(jnp.all((uncertainty >= 0.0) & (uncertainty <= 1.0)))

    v_ref, u_ref = _reference_forward(x, params, USE_UNC)
    assert bool(jnp.allclose(value, v_ref, rtol=1e-2, atol=1e-2))
    if USE_UNC:
        assert bool(jnp.allclose(uncertainty, u_ref, rtol=1e-2, atol=1e-2))

    print("KERNEL_OK")
</pallas_src>

<mosaic_0001>
module attributes {stable_mosaic.version = 11 : i64} {
  func.func @_value_function_kernel(%arg0: i32, %arg1: i32, %arg2: memref<2x8x32xf32, #tpu.memory_space<vmem>>, %arg3: memref<32x32xbf16, #tpu.memory_space<vmem>>, %arg4: memref<1x32xf32, #tpu.memory_space<vmem>>, %arg5: memref<1x32xf32, #tpu.memory_space<vmem>>, %arg6: memref<1x32xf32, #tpu.memory_space<vmem>>, %arg7: memref<32x16xbf16, #tpu.memory_space<vmem>>, %arg8: memref<1x16xf32, #tpu.memory_space<vmem>>, %arg9: memref<1x16xf32, #tpu.memory_space<vmem>>, %arg10: memref<1x1xf32, #tpu.memory_space<vmem>>, %arg11: memref<32x16xbf16, #tpu.memory_space<vmem>>, %arg12: memref<1x16xf32, #tpu.memory_space<vmem>>, %arg13: memref<1x16xf32, #tpu.memory_space<vmem>>, %arg14: memref<1x1xf32, #tpu.memory_space<vmem>>, %arg15: memref<2x1xf32, #tpu.memory_space<vmem>>, %arg16: memref<2x1xf32, #tpu.memory_space<vmem>>, %arg17: memref<2x32xf32, #tpu.memory_space<vmem>>) attributes {dimension_semantics = [#tpu.dimension_semantics<parallel>, #tpu.dimension_semantics<arbitrary>], iteration_bounds = array<i64: 1, 1>, scalar_prefetch = 0 : i64, scratch_operands = 1 : i64, tpu.core_type = #tpu.core_type<tc>, window_params = [{transform_indices = @transform_0, window_bounds = array<i64: 2, 8, 32>}, {pipeline_mode = #tpu.pipeline_mode<synchronous>, transform_indices = @transform_1, window_bounds = array<i64: 32, 32>}, {pipeline_mode = #tpu.pipeline_mode<synchronous>, transform_indices = @transform_2, window_bounds = array<i64: 1, 32>}, {pipeline_mode = #tpu.pipeline_mode<synchronous>, transform_indices = @transform_3, window_bounds = array<i64: 1, 32>}, {pipeline_mode = #tpu.pipeline_mode<synchronous>, transform_indices = @transform_4, window_bounds = array<i64: 1, 32>}, {pipeline_mode = #tpu.pipeline_mode<synchronous>, transform_indices = @transform_5, window_bounds = array<i64: 32, 16>}, {pipeline_mode = #tpu.pipeline_mode<synchronous>, transform_indices = @transform_6, window_bounds = array<i64: 1, 16>}, {pipeline_mode = #tpu.pipeline_mode<synchronous>, transform_indices = @transform_7, window_bounds = array<i64: 1, 16>}, {pipeline_mode = #tpu.pipeline_mode<synchronous>, transform_indices = @transform_8, window_bounds = array<i64: 1, 1>}, {pipeline_mode = #tpu.pipeline_mode<synchronous>, transform_indices = @transform_9, window_bounds = array<i64: 32, 16>}, {pipeline_mode = #tpu.pipeline_mode<synchronous>, transform_indices = @transform_10, window_bounds = array<i64: 1, 16>}, {pipeline_mode = #tpu.pipeline_mode<synchronous>, transform_indices = @transform_11, window_bounds = array<i64: 1, 16>}, {pipeline_mode = #tpu.pipeline_mode<synchronous>, transform_indices = @transform_12, window_bounds = array<i64: 1, 1>}, {transform_indices = @transform_13, window_bounds = array<i64: 2, 1>}, {transform_indices = @transform_14, window_bounds = array<i64: 2, 1>}]} {
    %c0_i32 = arith.constant 0 : i32
    %0 = arith.cmpi eq, %arg1, %c0_i32 : i32
    %1 = arith.extui %0 : i1 to i32
    %c0_i32_0 = arith.constant 0 : i32
    %2 = arith.cmpi ne, %1, %c0_i32_0 : i32
    scf.if %2 {
      %cst_9 = arith.constant 0.000000e+00 : f32
      %11 = vector.broadcast %cst_9 : f32 to vector<2x32xf32>
      %c0_10 = arith.constant 0 : index
      %c0_11 = arith.constant 0 : index
      %12 = vector.load %arg17[%c0_10, %c0_11] : memref<2x32xf32, #tpu.memory_space<vmem>>, vector<2x32xf32>
      tpu.vector_store %arg17[%c0_10, %c0_11], %11 {strides = array<i32>} : memref<2x32xf32, #tpu.memory_space<vmem>>, vector<2x32xf32>,
    } else {
    }
    %c0 = arith.constant 0 : index
    %c0_1 = arith.constant 0 : index
    %3 = vector.load %arg17[%c0, %c0_1] : memref<2x32xf32, #tpu.memory_space<vmem>>, vector<2x32xf32>
    %c0_2 = arith.constant 0 : index
    %c0_3 = arith.constant 0 : index
    %c0_4 = arith.constant 0 : index
    %4 = vector.load %arg2[%c0_2, %c0_3, %c0_4] : memref<2x8x32xf32, #tpu.memory_space<vmem>>, vector<2x8x32xf32>
    %cst = arith.constant dense<0.000000e+00> : vector<2x32xf32>
    %5 = vector.multi_reduction <add>, %4, %cst [1] : vector<2x8x32xf32> to vector<2x32xf32>
    %6 = arith.addf %3, %5 : vector<2x32xf32>
    %c0_5 = arith.constant 0 : index
    %c0_6 = arith.constant 0 : index
    %7 = vector.load %arg17[%c0_5, %c0_6] : memref<2x32xf32, #tpu.memory_space<vmem>>, vector<2x32xf32>
    tpu.vector_store %arg17[%c0_5, %c0_6], %6 {strides = array<i32>} : memref<2x32xf32, #tpu.memory_space<vmem>>, vector<2x32xf32>,
    %c0_i32_7 = arith.constant 0 : i32
    %8 = arith.cmpi eq, %arg1, %c0_i32_7 : i32
    %9 = arith.extui %8 : i1 to i32
    %c0_i32_8 = arith.constant 0 : i32
    %10 = arith.cmpi ne, %9, %c0_i32_8 : i32
    scf.if %10 {
      %c0_9 = arith.constant 0 : index
      %c0_10 = arith.constant 0 : index
      %11 = vector.load %arg17[%c0_9, %c0_10] : memref<2x32xf32, #tpu.memory_space<vmem>>, vector<2x32xf32>
      %cst_11 = arith.constant 1.250000e-01 : f32
      %12 = vector.broadcast %cst_11 : f32 to vector<2x32xf32>
      %13 = arith.mulf %11, %12 : vector<2x32xf32>
      %14 = arith.truncf %13 : vector<2x32xf32> to vector<2x32xbf16>
      %c0_12 = arith.constant 0 : index
      %c0_13 = arith.constant 0 : index
      %15 = vector.load %arg3[%c0_12, %c0_13] : memref<32x32xbf16, #tpu.memory_space<vmem>>, vector<32x32xbf16>
      %cst_14 = arith.constant dense<0.000000e+00> : vector<2x32xf32>
      %16 = tpu.matmul %14, %15, %cst_14 {dimension_numbers = #tpu.dot_dimension_numbers<[1], [0], [0], [1], [0, 0, 1, 1], [], []>} : vector<2x32xbf16>, vector<32x32xbf16>, vector<2x32xf32> -> vector<2x32xf32>
      %c0_15 = arith.constant 0 : index
      %c0_16 = arith.constant 0 : index
      %17 = vector.load %arg4[%c0_15, %c0_16] : memref<1x32xf32, #tpu.memory_space<vmem>>, vector<1x32xf32>
      %18 = vector.broadcast %17 : vector<1x32xf32> to vector<2x32xf32>
      %19 = arith.addf %16, %18 : vector<2x32xf32>
      %cst_17 = arith.constant dense<0.000000e+00> : vector<2xf32>
      %20 = vector.multi_reduction <add>, %19, %cst_17 [1] : vector<2x32xf32> to vector<2xf32>
      %21 = vector.shape_cast %20 : vector<2xf32> to vector<2x1xf32>
      %cst_18 = arith.constant 3.200000e+01 : f32
      %22 = vector.broadcast %cst_18 : f32 to vector<2x1xf32>
      %23 = arith.divf %21, %22 : vector<2x1xf32>
      %24 = vector.broadcast %23 : vector<2x1xf32> to vector<2x32xf32>
      %25 = arith.subf %19, %24 : vector<2x32xf32>
      %26 = arith.mulf %25, %25 : vector<2x32xf32>
      %cst_19 = arith.constant dense<0.000000e+00> : vector<2xf32>
      %27 = vector.multi_reduction <add>, %26, %cst_19 [1] : vector<2x32xf32> to vector<2xf32>
      %28 = vector.shape_cast %27 : vector<2xf32> to vector<2x1xf32>
      %cst_20 = arith.constant 3.200000e+01 : f32
      %29 = vector.broadcast %cst_20 : f32 to vector<2x1xf32>
      %30 = arith.divf %28, %29 : vector<2x1xf32>
      %31 = vector.broadcast %23 : vector<2x1xf32> to vector<2x32xf32>
      %32 = arith.subf %19, %31 : vector<2x32xf32>
      %cst_21 = arith.constant 9.99999974E-6 : f32
      %33 = vector.broadcast %cst_21 : f32 to vector<2x1xf32>
      %34 = arith.addf %30, %33 : vector<2x1xf32>
      %35 = math.rsqrt %34 : vector<2x1xf32>
      %36 = vector.broadcast %35 : vector<2x1xf32> to vector<2x32xf32>
      %37 = arith.mulf %32, %36 : vector<2x32xf32>
      %c0_22 = arith.constant 0 : index
      %c0_23 = arith.constant 0 : index
      %38 = vector.load %arg5[%c0_22, %c0_23] : memref<1x32xf32, #tpu.memory_space<vmem>>, vector<1x32xf32>
      %39 = vector.broadcast %38 : vector<1x32xf32> to vector<2x32xf32>
      %40 = arith.mulf %37, %39 : vector<2x32xf32>
      %c0_24 = arith.constant 0 : index
      %c0_25 = arith.constant 0 : index
      %41 = vector.load %arg6[%c0_24, %c0_25] : memref<1x32xf32, #tpu.memory_space<vmem>>, vector<1x32xf32>
      %42 = vector.broadcast %41 : vector<1x32xf32> to vector<2x32xf32>
      %43 = arith.addf %40, %42 : vector<2x32xf32>
      %cst_26 = arith.constant 5.000000e-01 : f32
      %44 = vector.broadcast %cst_26 : f32 to vector<2x32xf32>
      %45 = arith.mulf %44, %43 : vector<2x32xf32>
      %cst_27 = arith.constant 0.707106769 : f32
      %46 = vector.broadcast %cst_27 : f32 to vector<2x32xf32>
      %47 = arith.mulf %43, %46 : vector<2x32xf32>
      %48 = math.erf %47 : vector<2x32xf32>
      %cst_28 = arith.constant 1.000000e+00 : f32
      %49 = vector.broadcast %cst_28 : f32 to vector<2x32xf32>
      %50 = arith.addf %49, %48 : vector<2x32xf32>
      %51 = arith.mulf %45, %50 : vector<2x32xf32>
      %52 = arith.truncf %51 : vector<2x32xf32> to vector<2x32xbf16>
      %c0_29 = arith.constant 0 : index
      %c0_30 = arith.constant 0 : index
      %53 = vector.load %arg7[%c0_29, %c0_30] : memref<32x16xbf16, #tpu.memory_space<vmem>>, vector<32x16xbf16>
      %cst_31 = arith.constant dense<0.000000e+00> : vector<2x16xf32>
      %54 = tpu.matmul %52, %53, %cst_31 {dimension_numbers = #tpu.dot_dimension_numbers<[1], [0], [0], [1], [0, 0, 1, 1], [], []>} : vector<2x32xbf16>, vector<32x16xbf16>, vector<2x16xf32> -> vector<2x16xf32>
      %c0_32 = arith.constant 0 : index
      %c0_33 = arith.constant 0 : index
      %55 = vector.load %arg8[%c0_32, %c0_33] : memref<1x16xf32, #tpu.memory_space<vmem>>, vector<1x16xf32>
      %56 = vector.broadcast %55 : vector<1x16xf32> to vector<2x16xf32>
      %57 = arith.addf %54, %56 : vector<2x16xf32>
      %cst_34 = arith.constant 5.000000e-01 : f32
      %58 = vector.broadcast %cst_34 : f32 to vector<2x16xf32>
      %59 = arith.mulf %58, %57 : vector<2x16xf32>
      %cst_35 = arith.constant 0.707106769 : f32
      %60 = vector.broadcast %cst_35 : f32 to vector<2x16xf32>
      %61 = arith.mulf %57, %60 : vector<2x16xf32>
      %62 = math.erf %61 : vector<2x16xf32>
      %cst_36 = arith.constant 1.000000e+00 : f32
      %63 = vector.broadcast %cst_36 : f32 to vector<2x16xf32>
      %64 = arith.addf %63, %62 : vector<2x16xf32>
      %65 = arith.mulf %59, %64 : vector<2x16xf32>
      %c0_37 = arith.constant 0 : index
      %c0_38 = arith.constant 0 : index
      %66 = vector.load %arg9[%c0_37, %c0_38] : memref<1x16xf32, #tpu.memory_space<vmem>>, vector<1x16xf32>
      %67 = vector.broadcast %66 : vector<1x16xf32> to vector<2x16xf32>
      %68 = arith.mulf %65, %67 : vector<2x16xf32>
      %cst_39 = arith.constant dense<0.000000e+00> : vector<2xf32>
      %69 = vector.multi_reduction <add>, %68, %cst_39 [1] : vector<2x16xf32> to vector<2xf32>
      %70 = vector.shape_cast %69 : vector<2xf32> to vector<2x1xf32>
      %c0_40 = arith.constant 0 : index
      %c0_41 = arith.constant 0 : index
      %71 = vector.load %arg10[%c0_40, %c0_41] : memref<1x1xf32, #tpu.memory_space<vmem>>, vector<1x1xf32>
      %72 = vector.broadcast %71 : vector<1x1xf32> to vector<2x1xf32>
      %73 = arith.addf %70, %72 : vector<2x1xf32>
      %c0_42 = arith.constant 0 : index
      %c0_43 = arith.constant 0 : index
      %74 = vector.load %arg15[%c0_42, %c0_43] : memref<2x1xf32, #tpu.memory_space<vmem>>, vector<2x1xf32>
      tpu.vector_store %arg15[%c0_42, %c0_43], %73 {strides = array<i32>} : memref<2x1xf32, #tpu.memory_space<vmem>>, vector<2x1xf32>,
      %75 = arith.truncf %13 : vector<2x32xf32> to vector<2x32xbf16>
      %c0_44 = arith.constant 0 : index
      %c0_45 = arith.constant 0 : index
      %76 = vector.load %arg11[%c0_44, %c0_45] : memref<32x16xbf16, #tpu.memory_space<vmem>>, vector<32x16xbf16>
      %cst_46 = arith.constant dense<0.000000e+00> : vector<2x16xf32>
      %77 = tpu.matmul %75, %76, %cst_46 {dimension_numbers = #tpu.dot_dimension_numbers<[1], [0], [0], [1], [0, 0, 1, 1], [], []>} : vector<2x32xbf16>, vector<32x16xbf16>, vector<2x16xf32> -> vector<2x16xf32>
      %c0_47 = arith.constant 0 : index
      %c0_48 = arith.constant 0 : index
      %78 = vector.load %arg12[%c0_47, %c0_48] : memref<1x16xf32, #tpu.memory_space<vmem>>, vector<1x16xf32>
      %79 = vector.broadcast %78 : vector<1x16xf32> to vector<2x16xf32>
      %80 = arith.addf %77, %79 : vector<2x16xf32>
      %cst_49 = arith.constant 5.000000e-01 : f32
      %81 = vector.broadcast %cst_49 : f32 to vector<2x16xf32>
      %82 = arith.mulf %81, %80 : vector<2x16xf32>
      %cst_50 = arith.constant 0.707106769 : f32
      %83 = vector.broadcast %cst_50 : f32 to vector<2x16xf32>
      %84 = arith.mulf %80, %83 : vector<2x16xf32>
      %85 = math.erf %84 : vector<2x16xf32>
      %cst_51 = arith.constant 1.000000e+00 : f32
      %86 = vector.broadcast %cst_51 : f32 to vector<2x16xf32>
      %87 = arith.addf %86, %85 : vector<2x16xf32>
      %88 = arith.mulf %82, %87 : vector<2x16xf32>
      %c0_52 = arith.constant 0 : index
      %c0_53 = arith.constant 0 : index
      %89 = vector.load %arg13[%c0_52, %c0_53] : memref<1x16xf32, #tpu.memory_space<vmem>>, vector<1x16xf32>
      %90 = vector.broadcast %89 : vector<1x16xf32> to vector<2x16xf32>
      %91 = arith.mulf %88, %90 : vector<2x16xf32>
      %cst_54 = arith.constant dense<0.000000e+00> : vector<2xf32>
      %92 = vector.multi_reduction <add>, %91, %cst_54 [1] : vector<2x16xf32> to vector<2xf32>
      %93 = vector.shape_cast %92 : vector<2xf32> to vector<2x1xf32>
      %c0_55 = arith.constant 0 : index
      %c0_56 = arith.constant 0 : index
      %94 = vector.load %arg14[%c0_55, %c0_56] : memref<1x1xf32, #tpu.memory_space<vmem>>, vector<1x1xf32>
      %95 = vector.broadcast %94 : vector<1x1xf32> to vector<2x1xf32>
      %96 = arith.addf %93, %95 : vector<2x1xf32>
      %97 = arith.negf %96 : vector<2x1xf32>
      %98 = math.exp %97 : vector<2x1xf32>
      %cst_57 = arith.constant 1.000000e+00 : f32
      %99 = vector.broadcast %cst_57 : f32 to vector<2x1xf32>
      %100 = arith.addf %99, %98 : vector<2x1xf32>
      %101 = arith.divf %99, %100 : vector<2x1xf32>
      %c0_58 = arith.constant 0 : index
      %c0_59 = arith.constant 0 : index
      %102 = vector.load %arg16[%c0_58, %c0_59] : memref<2x1xf32, #tpu.memory_space<vmem>>, vector<2x1xf32>
      tpu.vector_store %arg16[%c0_58, %c0_59], %101 {strides = array<i32>} : memref<2x1xf32, #tpu.memory_space<vmem>>, vector<2x1xf32>,
    } else {
    }
    return
  }
  func.func @transform_0(%arg0: i32, %arg1: i32) -> (i32, i32, i32) {
    %c0_i32 = arith.constant 0 : i32
    %c0_i32_0 = arith.constant 0 : i32
    return %arg0, %arg1, %c0_i32 : i32, i32, i32
  }
  func.func @transform_1(%arg0: i32, %arg1: i32) -> (i32, i32) {
    %c0_i32 = arith.constant 0 : i32
    %c0_i32_0 = arith.constant 0 : i32
    %c0_i32_1 = arith.constant 0 : i32
    return %c0_i32, %c0_i32_0 : i32, i32
  }
  func.func @transform_2(%arg0: i32, %arg1: i32) -> (i32, i32) {
    %c0_i32 = arith.constant 0 : i32
    %c0_i32_0 = arith.constant 0 : i32
    %c0_i32_1 = arith.constant 0 : i32
    return %c0_i32, %c0_i32_0 : i32, i32
  }
  func.func @transform_3(%arg0: i32, %arg1: i32) -> (i32, i32) {
    %c0_i32 = arith.constant 0 : i32
    %c0_i32_0 = arith.constant 0 : i32
    %c0_i32_1 = arith.constant 0 : i32
    return %c0_i32, %c0_i32_0 : i32, i32
  }
  func.func @transform_4(%arg0: i32, %arg1: i32) -> (i32, i32) {
    %c0_i32 = arith.constant 0 : i32
    %c0_i32_0 = arith.constant 0 : i32
    %c0_i32_1 = arith.constant 0 : i32
    return %c0_i32, %c0_i32_0 : i32, i32
  }
  func.func @transform_5(%arg0: i32, %arg1: i32) -> (i32, i32) {
    %c0_i32 = arith.constant 0 : i32
    %c0_i32_0 = arith.constant 0 : i32
    %c0_i32_1 = arith.constant 0 : i32
    return %c0_i32, %c0_i32_0 : i32, i32
  }
  func.func @transform_6(%arg0: i32, %arg1: i32) -> (i32, i32) {
    %c0_i32 = arith.constant 0 : i32
    %c0_i32_0 = arith.constant 0 : i32
    %c0_i32_1 = arith.constant 0 : i32
    return %c0_i32, %c0_i32_0 : i32, i32
  }
  func.func @transform_7(%arg0: i32, %arg1: i32) -> (i32, i32) {
    %c0_i32 = arith.constant 0 : i32
    %c0_i32_0 = arith.constant 0 : i32
    %c0_i32_1 = arith.constant 0 : i32
    return %c0_i32, %c0_i32_0 : i32, i32
  }
  func.func @transform_8(%arg0: i32, %arg1: i32) -> (i32, i32) {
    %c0_i32 = arith.constant 0 : i32
    %c0_i32_0 = arith.constant 0 : i32
    %c0_i32_1 = arith.constant 0 : i32
    return %c0_i32, %c0_i32_0 : i32, i32
  }
  func.func @transform_9(%arg0: i32, %arg1: i32) -> (i32, i32) {
    %c0_i32 = arith.constant 0 : i32
    %c0_i32_0 = arith.constant 0 : i32
    %c0_i32_1 = arith.constant 0 : i32
    return %c0_i32, %c0_i32_0 : i32, i32
  }
  func.func @transform_10(%arg0: i32, %arg1: i32) -> (i32, i32) {
    %c0_i32 = arith.constant 0 : i32
    %c0_i32_0 = arith.constant 0 : i32
    %c0_i32_1 = arith.constant 0 : i32
    return %c0_i32, %c0_i32_0 : i32, i32
  }
  func.func @transform_11(%arg0: i32, %arg1: i32) -> (i32, i32) {
    %c0_i32 = arith.constant 0 : i32
    %c0_i32_0 = arith.constant 0 : i32
    %c0_i32_1 = arith.constant 0 : i32
    return %c0_i32, %c0_i32_0 : i32, i32
  }
  func.func @transform_12(%arg0: i32, %arg1: i32) -> (i32, i32) {
    %c0_i32 = arith.constant 0 : i32
    %c0_i32_0 = arith.constant 0 : i32
    %c0_i32_1 = arith.constant 0 : i32
    return %c0_i32, %c0_i32_0 : i32, i32
  }
  func.func @transform_13(%arg0: i32, %arg1: i32) -> (i32, i32) {
    %c0_i32 = arith.constant 0 : i32
    %c0_i32_0 = arith.constant 0 : i32
    return %arg0, %c0_i32 : i32, i32
  }
  func.func @transform_14(%arg0: i32, %arg1: i32) -> (i32, i32) {
    %c0_i32 = arith.constant 0 : i32
    %c0_i32_0 = arith.constant 0 : i32
    return %arg0, %c0_i32 : i32, i32
  }
}

</mosaic_0001>

<llo_original>
// kernel: value_function_forward.1
$region0: #{value_function_forward.1}
  #allocation0 [shape = 'u32[]', space=smem, size = 0x4, offset = 0x4, fixed_abs, tag = 'smem constant byte address 0x4 - core index']
  #allocation1 [shape = 'u32[144,128]{1,0:T(1,128)}', space=vmem, size = 0x12000, scoped, tag = 'internal scratch']
  #allocation2 [shape = 'f32[2,32]{1,0:T(2,128)}', space=vmem, size = 0x400, scoped, tag = 'scratch operand']
  #allocation3 [shape = 'f32[1,1]{1,0:T(1,128)S(1)}', space=vmem, size = 0x200, scoped, tag = 'scoped memory for value_function_forward.1']
  #allocation4 [shape = 'f32[1,1]{1,0:T(1,128)S(1)}', space=vmem, size = 0x200, scoped, tag = 'scoped memory for value_function_forward.1']
  %s0 = inlined_call_operand.vmem [shape: f32[2,8,32], index: 0, kind: input, shape index: {}]
  %s1 = inlined_call_operand.vmem [shape: bf16[32,32], index: 1, kind: input, shape index: {}]
  %s2 = inlined_call_operand.vmem [shape: f32[1,32], index: 2, kind: input, shape index: {}]
  %s3 = inlined_call_operand.vmem [shape: f32[1,32], index: 3, kind: input, shape index: {}]
  %s4 = inlined_call_operand.vmem [shape: f32[1,32], index: 4, kind: input, shape index: {}]
  %s5 = inlined_call_operand.vmem [shape: bf16[32,16], index: 5, kind: input, shape index: {}]
  %s6 = inlined_call_operand.vmem [shape: f32[1,16], index: 6, kind: input, shape index: {}]
  %s7 = inlined_call_operand.vmem [shape: f32[1,16], index: 7, kind: input, shape index: {}]
  %s8 = inlined_call_operand.<no memory space> [shape: f32[1,1], index: 8, kind: input, shape index: {}]
  %s9 = inlined_call_operand.vmem [shape: bf16[32,16], index: 9, kind: input, shape index: {}]
  %s10 = inlined_call_operand.vmem [shape: f32[1,16], index: 10, kind: input, shape index: {}]
  %s11 = inlined_call_operand.vmem [shape: f32[1,16], index: 11, kind: input, shape index: {}]
  %s12 = inlined_call_operand.<no memory space> [shape: f32[1,1], index: 12, kind: input, shape index: {}]
  %s13 = inlined_call_operand.vmem [shape: f32[2,1], index: 13, kind: output, shape index: {0}]
  %s14 = inlined_call_operand.vmem [shape: f32[2,1], index: 14, kind: output, shape index: {1}]
  %15 = xla_tuple %s13, %s14
  %s16 = sld [smem:[#allocation0]]
  $region78: #{value_function_forward.1} parent=0
    _
  %s18 = ssub.s32 1, %s16
  %s19 = scalar_select 0, %s18, %s16
  %v20 = vstv %s8
  %21 = vst [vmem:[#allocation3] sm:$0x1] %v20
  %v22 = vstv %s12
  %23 = vst [vmem:[#allocation4] sm:$0x1] %v22
  // Predicated region
  $region2: #{value_function_forward.1} parent=0 // pred_check
    _
  $region3: #{value_function_forward.1} parent=0 // pred_check_branch
    %25 = sbr.rel (0) target = $region5
  $region4: #{value_function_forward.1} parent=0 // pred_region
    _
  $region5: #{value_function_forward.1} parent=0 // pred_fallthru
    _
  // Predicated region
  $region6: #{value_function_forward.1} parent=0 // pred_check
    _
  $region7: #{value_function_forward.1} parent=0 // pred_check_branch
    %27 = sbr.rel (0) target = $region9
  $region8: #{value_function_forward.1} parent=0 // pred_region
    _
  $region9: #{value_function_forward.1} parent=0 // pred_fallthru
    _
  // Predicated region
  $region10: #{value_function_forward.1} parent=0 // pred_check
    _
  $region11: #{value_function_forward.1} parent=0 // pred_check_branch
    %29 = sbr.rel (0) target = $region13
  $region12: #{value_function_forward.1} parent=0 // pred_region
    _
  $region13: #{value_function_forward.1} parent=0 // pred_fallthru
    _
  // Predicated region
  $region14: #{value_function_forward.1} parent=0 // pred_check
    _
  $region15: #{value_function_forward.1} parent=0 // pred_check_branch
    %31 = sbr.rel (0) target = $region17
  $region16: #{value_function_forward.1} parent=0 // pred_region
    _
  $region17: #{value_function_forward.1} parent=0 // pred_fallthru
    _
  // Predicated region
  $region18: #{value_function_forward.1} parent=0 // pred_check
    _
  $region19: #{value_function_forward.1} parent=0 // pred_check_branch
    %33 = sbr.rel (0) target = $region21
  $region20: #{value_function_forward.1} parent=0 // pred_region
    _
  $region21: #{value_function_forward.1} parent=0 // pred_fallthru
    _
  // Predicated region
  $region22: #{value_function_forward.1} parent=0 // pred_check
    _
  $region23: #{value_function_forward.1} parent=0 // pred_check_branch
    %35 = sbr.rel (0) target = $region25
  $region24: #{value_function_forward.1} parent=0 // pred_region
    _
  $region25: #{value_function_forward.1} parent=0 // pred_fallthru
    _
  // Predicated region
  $region26: #{value_function_forward.1} parent=0 // pred_check
    _
  $region27: #{value_function_forward.1} parent=0 // pred_check_branch
    %37 = sbr.rel (0) target = $region29
  $region28: #{value_function_forward.1} parent=0 // pred_region
    _
  $region29: #{value_function_forward.1} parent=0 // pred_fallthru
    _
  // Predicated region
  $region30: #{value_function_forward.1} parent=0 // pred_check
    _
  $region31: #{value_function_forward.1} parent=0 // pred_check_branch
    %39 = sbr.rel (0) target = $region33
  $region32: #{value_function_forward.1} parent=0 // pred_region
    _
  $region33: #{value_function_forward.1} parent=0 // pred_fallthru
    _
  // Predicated region
  $region34: #{value_function_forward.1} parent=0 // pred_check
    _
  $region35: #{value_function_forward.1} parent=0 // pred_check_branch
    %41 = sbr.rel (0) target = $region37
  $region36: #{value_function_forward.1} parent=0 // pred_region
    _
  $region37: #{value_function_forward.1} parent=0 // pred_fallthru
    _
  // Predicated region
  $region38: #{value_function_forward.1} parent=0 // pred_check
    _
  $region39: #{value_function_forward.1} parent=0 // pred_check_branch
    %43 = sbr.rel (0) target = $region41
  $region40: #{value_function_forward.1} parent=0 // pred_region
    _
  $region41: #{value_function_forward.1} parent=0 // pred_fallthru
    _
  // Predicated region
  $region42: #{value_function_forward.1} parent=0 // pred_check
    _
  $region43: #{value_function_forward.1} parent=0 // pred_check_branch
    %45 = sbr.rel (0) target = $region45
  $region44: #{value_function_forward.1} parent=0 // pred_region
    _
  $region45: #{value_function_forward.1} parent=0 // pred_fallthru
    _
  // Predicated region
  $region46: #{value_function_forward.1} parent=0 // pred_check
    _
  $region47: #{value_function_forward.1} parent=0 // pred_check_branch
    %47 = sbr.rel (0) target = $region49
  $region48: #{value_function_forward.1} parent=0 // pred_region
    _
  $region49: #{value_function_forward.1} parent=0 // pred_fallthru
    _
  // Predicated region
  $region50: #{value_function_forward.1} parent=0 // pred_check
    _
  $region51: #{value_function_forward.1} parent=0 // pred_check_branch
    %49 = sbr.rel (0) target = $region53
  $region52: #{value_function_forward.1} parent=0 // pred_region
    _
  $region53: #{value_function_forward.1} parent=0 // pred_fallthru
    _
  %p51 = scmp.eq.s32.totalorder 0, 0
  // Predicated region
  $region54: #{value_function_forward.1} parent=0 // pred_check
    %p52 = pneg %p51
  $region55: #{value_function_forward.1} parent=0 // pred_check_branch
    %54 = sbr.rel (%p52) target = $region57
  $region56: #{value_function_forward.1} parent=0 // pred_region
    %vm55 = vcmask 254976
    %56 = vst.msk [vmem:[#allocation2] sm:$0x3] %vm55, 0.0
  $region57: #{value_function_forward.1} parent=0 // pred_fallthru
    _
  %v57 = vld [vmem:[#allocation2] sm:$0x3]
  %v58 = vld [vmem:[%s0] sm:$0xff]
  %v59 = vld [vmem:[%s0 + $0x8] sm:$0xff]
  %vm60 = vcmask 261120
  %v61 = vsel %vm60, %v58, 0.0
  %v62 = vrot.slane %v61, 4
  %v63 = vadd.f32 %v61, %v62
  %v64 = vrot.slane %v63, 2
  %v65 = vadd.f32 %v63, %v64
  %v66 = vrot.slane %v65, 1
  %v67 = vadd.f32 %v65, %v66
  %v68 = vsel %vm60, %v59, 0.0
  %v69 = vrot.slane %v68, 4
  %v70 = vadd.f32 %v68, %v69
  %v71 = vrot.slane %v70, 2
  %v72 = vadd.f32 %v70, %v71
  %v73 = vrot.slane %v72, 1
  %v74 = vadd.f32 %v72, %v73
  %vm77 = vcmask 1041409
  %v78 = vsel %vm77, %v74, %v67
  %v80 = vadd.f32 %v57, %v78
  %vm81 = vcmask 254976
  %82 = vst.msk [vmem:[#allocation2] sm:$0x3] %vm81, %v80
  // Predicated region
  $region58: #{value_function_forward.1} parent=0 // pred_check
    %p83 = pneg %p51
  $region59: #{value_function_forward.1} parent=0 // pred_check_branch
    %85 = sbr.rel (%p83) target = $region61
  $region60: #{value_function_forward.1} parent=0 // pred_region
    %v86 = vld [vmem:[#allocation2] sm:$0x3]
    %v87 = vmul.f32 %v86, 0.125
    %v88 = vpack.c.bf16 %v87, %v87
    %v89 = vld [vmem:[%s1] sm:$0xf]
    %v90 = vld [vmem:[%s1 + $0x4] sm:$0xf]
    %v91 = vld [vmem:[%s1 + $0x8] sm:$0xf]
    %v92 = vld [vmem:[%s1 + $0xc] sm:$0xf]
    %v93 = vld [vmem:[%s2] sm:$0x1]
    %v95 = vlaneseq
    %v96 = vshrl.u32 %v95, 7
    %v97 = vsub.s32 0, %v96
    %v98 = vrot.slane %v93, %v97
    %v104 = vunpack.c.l.b16 %v89
    %v105 = vunpack.c.l.b16 %v90
    %v106 = vunpack.c.l.b16 %v91
    %v107 = vunpack.c.l.b16 %v92
    %v108 = vpack.c.b16 %v105, %v104
    %v109 = vpack.c.b16 %v107, %v106
    %v113 = vsel %vm60, %v88, 0
    %115 = vmatprep.subr.bf16.mxu0 0
    %116 = vmatpush1.bf16.msra.mxu0 0
    %117 = vmatprep.subr.bf16.mxu0 0
    %118 = vmatpush1.bf16.msra.mxu0 0
    %119 = vmatprep.subr.bf16.mxu0 0
    %120 = vmatpush1.bf16.msra.mxu0 0
    %121 = vmatprep.subr.bf16.mxu0 0
    %122 = vmatpush1.bf16.msra.mxu0 0
    %123 = vmatprep.subr.bf16.mxu0 0
    %124 = vmatpush1.bf16.msra.mxu0 0
    %125 = vmatprep.subr.bf16.mxu0 0
    %126 = vmatpush1.bf16.msra.mxu0 0
    %127 = vmatprep.subr.bf16.mxu0 0
    %128 = vmatpush1.bf16.msra.mxu0 %v109
    %129 = vmatprep.subr.bf16.mxu0 0
    %130 = vmatpush1.bf16.msra.mxu0 %v108
    %131 = vmatprep.subr.bf16.mxu0 0
    %132 = vmatpush2.bf16.msra.mxu0 0
    %133 = vmatprep.subr.bf16.mxu0 0
    %134 = vmatpush2.bf16.msra.mxu0 0
    %135 = vmatprep.subr.bf16.mxu0 0
    %136 = vmatpush2.bf16.msra.mxu0 0
    %137 = vmatprep.subr.bf16.mxu0 0
    %138 = vmatpush2.bf16.msra.mxu0 0
    %139 = vmatprep.subr.bf16.mxu0 0
    %140 = vmatpush2.bf16.msra.mxu0 0
    %141 = vmatprep.subr.bf16.mxu0 0
    %142 = vmatpush2.bf16.msra.mxu0 0
    %143 = vmatprep.subr.bf16.mxu0 0
    %144 = vmatpush2.bf16.msra.mxu0 0
    %145 = vmatprep.subr.bf16.mxu0 0
    %146 = vmatpush2.bf16.msra.mxu0 0
    %147 = vmatprep.mubr.bf16.mxu0 0
    %148 = vmatmul.mubr.bf16.gmra.mxu0 %v113
    %v149 = vpop.f32.mrf.mxu0
    %v150 = vadd.f32 %v98, %v149
    %v151 = vpop.f32.mrf.mxu0
    %v152 = vpop.f32.mrf.mxu0
    %v153 = vpop.f32.mrf.mxu0
    %154 = vdwg.mxu0
    %v155 = vsel %vm81, %v150, 0.0
    %156 = vadd.xlane.f32.xlu0 %v155
    %v157 = vpop.xlane.xlu0 %156
    %v158 = vrcp.pop 32.0
    %v159 = vmul.f32 %v157, %v158
    %v160 = vsub.f32 %v150, %v159
    %v161 = vmul.f32 %v160, %v160
    %v162 = vsel %vm81, %v161, 0.0
    %163 = vadd.xlane.f32.xlu0 %v162
    %v164 = vpop.xlane.xlu0 %163
    %v165 = vmul.f32 %v164, %v158
    %v166 = vadd.f32 %v165, 1e-05
    %v167 = vrsqrt.pop %v166
    %v168 = vmul.f32 %v160, %v167
    %v169 = vld [vmem:[%s3] sm:$0x1]
    %v171 = vlaneseq
    %v172 = vshrl.u32 %v171, 7
    %v173 = vsub.s32 0, %v172
    %v174 = vrot.slane %v169, %v173
    %v176 = vmul.f32 %v168, %v174
    %v177 = vld [vmem:[%s4] sm:$0x1]
    %v179 = vlaneseq
    %v180 = vshrl.u32 %v179, 7
    %v181 = vsub.s32 0, %v180
    %v182 = vrot.slane %v177, %v181
    %v184 = vadd.f32 %v176, %v182
    %v185 = vmul.f32 %v184, 0.5
    %v186 = vmul.f32 %v184, 0.70710677
    %v187 = verf.f32.pop %v186
    %v188 = vadd.f32 %v187, 1.0
    %v189 = vmul.f32 %v185, %v188
    %v190 = vpack.c.bf16 %v189, %v189
    %v191 = vld [vmem:[%s5] sm:$0xf]
    %v192 = vld [vmem:[%s5 + $0x4] sm:$0xf]
    %v193 = vld [vmem:[%s5 + $0x8] sm:$0xf]
    %v194 = vld [vmem:[%s5 + $0xc] sm:$0xf]
    %v195 = vld [vmem:[%s6] sm:$0x1]
    %v197 = vlaneseq
    %v198 = vshrl.u32 %v197, 7
    %v199 = vsub.s32 0, %v198
    %v200 = vrot.slane %v195, %v199
    %v206 = vunpack.c.l.b16 %v191
    %v207 = vunpack.c.l.b16 %v192
    %v208 = vunpack.c.l.b16 %v193
    %v209 = vunpack.c.l.b16 %v194
    %v210 = vpack.c.b16 %v207, %v206
    %v211 = vpack.c.b16 %v209, %v208
    %v215 = vsel %vm60, %v190, 0
    %217 = vmatprep.subr.bf16.mxu0 0
    %218 = vmatpush1.bf16.msra.mxu0 0
    %219 = vmatprep.subr.bf16.mxu0 0
    %220 = vmatpush1.bf16.msra.mxu0 0
    %221 = vmatprep.subr.bf16.mxu0 0
    %222 = vmatpush1.bf16.msra.mxu0 0
    %223 = vmatprep.subr.bf16.mxu0 0
    %224 = vmatpush1.bf16.msra.mxu0 0
    %225 = vmatprep.subr.bf16.mxu0 0
    %226 = vmatpush1.bf16.msra.mxu0 0
    %227 = vmatprep.subr.bf16.mxu0 0
    %228 = vmatpush1.bf16.msra.mxu0 0
    %229 = vmatprep.subr.bf16.mxu0 0
    %230 = vmatpush1.bf16.msra.mxu0 %v211
    %231 = vmatprep.subr.bf16.mxu0 0
    %232 = vmatpush1.bf16.msra.mxu0 %v210
    %233 = vmatprep.subr.bf16.mxu0 0
    %234 = vmatpush2.bf16.msra.mxu0 0
    %235 = vmatprep.subr.bf16.mxu0 0
    %236 = vmatpush2.bf16.msra.mxu0 0
    %237 = vmatprep.subr.bf16.mxu0 0
    %238 = vmatpush2.bf16.msra.mxu0 0
    %239 = vmatprep.subr.bf16.mxu0 0
    %240 = vmatpush2.bf16.msra.mxu0 0
    %241 = vmatprep.subr.bf16.mxu0 0
    %242 = vmatpush2.bf16.msra.mxu0 0
    %243 = vmatprep.subr.bf16.mxu0 0
    %244 = vmatpush2.bf16.msra.mxu0 0
    %245 = vmatprep.subr.bf16.mxu0 0
    %246 = vmatpush2.bf16.msra.mxu0 0
    %247 = vmatprep.subr.bf16.mxu0 0
    %248 = vmatpush2.bf16.msra.mxu0 0
    %249 = vmatprep.mubr.bf16.mxu0 0
    %250 = vmatmul.mubr.bf16.gmra.mxu0 %v215
    %v251 = vpop.f32.mrf.mxu0
    %v252 = vadd.f32 %v200, %v251
    %v253 = vpop.f32.mrf.mxu0
    %v254 = vpop.f32.mrf.mxu0
    %v255 = vpop.f32.mrf.mxu0
    %256 = vdwg.mxu0
    %v257 = vmul.f32 %v252, 0.5
    %v258 = vmul.f32 %v252, 0.70710677
    %v259 = verf.f32.pop %v258
    %v260 = vadd.f32 %v259, 1.0
    %v261 = vmul.f32 %v257, %v260
    %v262 = vld [vmem:[%s7] sm:$0x1]
    %v264 = vlaneseq
    %v265 = vshrl.u32 %v264, 7
    %v266 = vsub.s32 0, %v265
    %v267 = vrot.slane %v262, %v266
    %v269 = vmul.f32 %v261, %v267
    %vm270 = vcmask 123904
    %v271 = vsel %vm270, %v269, 0.0
    %272 = vadd.xlane.f32.xlu0 %v271
    %v273 = vpop.xlane.xlu0 %272
    %v274 = vld [vmem:[#allocation3] sm:$0x1]
    %v276 = vlaneseq
    %v277 = vshrl.u32 %v276, 7
    %v278 = vsub.s32 0, %v277
    %v279 = vrot.slane %v274, %v278
    %v281 = vadd.f32 %v273, %v279
    %vm282 = vcmask 1024
    %283 = vst.msk [vmem:[%s13] sm:$0x3] %vm282, %v281
    %v284 = vld [vmem:[%s9] sm:$0xf]
    %v285 = vld [vmem:[%s9 + $0x4] sm:$0xf]
    %v286 = vld [vmem:[%s9 + $0x8] sm:$0xf]
    %v287 = vld [vmem:[%s9 + $0xc] sm:$0xf]
    %v288 = vld [vmem:[%s10] sm:$0x1]
    %v290 = vlaneseq
    %v291 = vshrl.u32 %v290, 7
    %v292 = vsub.s32 0, %v291
    %v293 = vrot.slane %v288, %v292
    %v299 = vunpack.c.l.b16 %v284
    %v300 = vunpack.c.l.b16 %v285
    %v301 = vunpack.c.l.b16 %v286
    %v302 = vunpack.c.l.b16 %v287
    %v303 = vpack.c.b16 %v300, %v299
    %v304 = vpack.c.b16 %v302, %v301
    %307 = vmatprep.subr.bf16.mxu0 0
    %308 = vmatpush1.bf16.msra.mxu0 0
    %309 = vmatprep.subr.bf16.mxu0 0
    %310 = vmatpush1.bf16.msra.mxu0 0
    %311 = vmatprep.subr.bf16.mxu0 0
    %312 = vmatpush1.bf16.msra.mxu0 0
    %313 = vmatprep.subr.bf16.mxu0 0
    %314 = vmatpush1.bf16.msra.mxu0 0
    %315 = vmatprep.subr.bf16.mxu0 0
    %316 = vmatpush1.bf16.msra.mxu0 0
    %317 = vmatprep.subr.bf16.mxu0 0
    %318 = vmatpush1.bf16.msra.mxu0 0
    %319 = vmatprep.subr.bf16.mxu0 0
    %320 = vmatpush1.bf16.msra.mxu0 %v304
    %321 = vmatprep.subr.bf16.mxu0 0
    %322 = vmatpush1.bf16.msra.mxu0 %v303
    %323 = vmatprep.subr.bf16.mxu0 0
    %324 = vmatpush2.bf16.msra.mxu0 0
    %325 = vmatprep.subr.bf16.mxu0 0
    %326 = vmatpush2.bf16.msra.mxu0 0
    %327 = vmatprep.subr.bf16.mxu0 0
    %328 = vmatpush2.bf16.msra.mxu0 0
    %329 = vmatprep.subr.bf16.mxu0 0
    %330 = vmatpush2.bf16.msra.mxu0 0
    %331 = vmatprep.subr.bf16.mxu0 0
    %332 = vmatpush2.bf16.msra.mxu0 0
    %333 = vmatprep.subr.bf16.mxu0 0
    %334 = vmatpush2.bf16.msra.mxu0 0
    %335 = vmatprep.subr.bf16.mxu0 0
    %336 = vmatpush2.bf16.msra.mxu0 0
    %337 = vmatprep.subr.bf16.mxu0 0
    %338 = vmatpush2.bf16.msra.mxu0 0
    %339 = vmatprep.mubr.bf16.mxu0 0
    %340 = vmatmul.mubr.bf16.gmra.mxu0 %v113
    %v341 = vpop.f32.mrf.mxu0
    %v342 = vadd.f32 %v293, %v341
    %v343 = vpop.f32.mrf.mxu0
    %v344 = vpop.f32.mrf.mxu0
    %v345 = vpop.f32.mrf.mxu0
    %346 = vdwg.mxu0
    %v347 = vmul.f32 %v342, 0.5
    %v348 = vmul.f32 %v342, 0.70710677
    %v349 = verf.f32.pop %v348
    %v350 = vadd.f32 %v349, 1.0
    %v351 = vmul.f32 %v347, %v350
    %v352 = vld [vmem:[%s11] sm:$0x1]
    %v354 = vlaneseq
    %v355 = vshrl.u32 %v354, 7
    %v356 = vsub.s32 0, %v355
    %v357 = vrot.slane %v352, %v356
    %v359 = vmul.f32 %v351, %v357
    %v360 = vsel %vm270, %v359, 0.0
    %361 = vadd.xlane.f32.xlu0 %v360
    %v362 = vpop.xlane.xlu0 %361
    %v363 = vld [vmem:[#allocation4] sm:$0x1]
    %v365 = vlaneseq
    %v366 = vshrl.u32 %v365, 7
    %v367 = vsub.s32 0, %v366
    %v368 = vrot.slane %v363, %v367
    %v370 = vadd.f32 %v362, %v368
    %v371 = vxor.u32 %v370, 2147483648
    %v372 = vmul.f32 %v371, 1.442695
    %v373 = vpow.pop %v372
    %v374 = vadd.f32 %v373, 1.0
    %v375 = vrcp.pop %v374
    %v376 = vmul.f32 1.0, %v375
    %377 = vst.msk [vmem:[%s14] sm:$0x3] %vm282, %v376
  $region61: #{value_function_forward.1} parent=0 // pred_fallthru
    _
  // Predicated region
  $region62: #{value_function_forward.1} parent=0 // pred_check
    _
  $region63: #{value_function_forward.1} parent=0 // pred_check_branch
    %379 = sbr.rel (0) target = $region65
  $region64: #{value_function_forward.1} parent=0 // pred_region
    _
  $region65: #{value_function_forward.1} parent=0 // pred_fallthru
    _
  // Predicated region
  $region66: #{value_function_forward.1} parent=0 // pred_check
    _
  $region67: #{value_function_forward.1} parent=0 // pred_check_branch
    %381 = sbr.rel (0) target = $region69
  $region68: #{value_function_forward.1} parent=0 // pred_region
    _
  $region69: #{value_function_forward.1} parent=0 // pred_fallthru
    _
  // Predicated region
  $region70: #{value_function_forward.1} parent=0 // pred_check
    _
  $region71: #{value_function_forward.1} parent=0 // pred_check_branch
    %383 = sbr.rel (0) target = $region73
  $region72: #{value_function_forward.1} parent=0 // pred_region
    _
  $region73: #{value_function_forward.1} parent=0 // pred_fallthru
    _
  // Predicated region
  $region74: #{value_function_forward.1} parent=0 // pred_check
    _
  $region75: #{value_function_forward.1} parent=0 // pred_check_branch
    %385 = sbr.rel (0) target = $region77
  $region76: #{value_function_forward.1} parent=0 // pred_region
    _
  $region77: #{value_function_forward.1} parent=0 // pred_fallthru
    _

</llo_original>
